<compile_context>
chip_gen: v5e
topology: v5e:2x2
jax: 0.10.0
libtpu: 0.0.40
codegen_flags: <defaults>
</compile_context>

<pallas_src>
import jax
import jax.numpy as jnp
from jax.experimental import pallas as pl
from jax.experimental.pallas import tpu as pltpu

EPS = 1e-5


def _make_kernel(HW, Cout):
    """One grid step processes a single batch element, both branches fused."""
    inv_hw = 1.0 / float(HW)

    def kernel(p_ref, wf_ref, bf_ref, gf_ref, bef_ref, out_ref):
        # p_ref  : (1, 9*Cin, HW)   bf16 im2col patches (tap-major, cin-minor)
        # wf_ref : (2*Cout, 9*Cin)  bf16 fused weights (rows 0:Cout = 3x3 conv,
        #                           rows Cout:2*Cout = 1x1 conv at centre tap)
        # bf/gf/bef : (2*Cout, 1)   f32 bias / gamma / beta (3x3 rows first)
        # out_ref: (1, Cout, HW)    f32

        # Single MXU matmul covering both branches, f32 accumulation.
        y = jnp.dot(wf_ref[...], p_ref[0],
                    preferred_element_type=jnp.float32)            # (2*Cout, HW)
        y = jnp.maximum(y + bf_ref[...], 0.0)                      # bias + ReLU

        # Fused per-(branch, channel) GroupNorm over H*W (lane-axis reduce).
        s1 = jnp.sum(y, axis=-1, keepdims=True)
        s2 = jnp.sum(y * y, axis=-1, keepdims=True)
        mean = s1 * inv_hw
        var = jnp.maximum(s2 * inv_hw - mean * mean, 0.0)          # biased var
        scale = gf_ref[...] * jax.lax.rsqrt(var + EPS)
        shift = bef_ref[...] - mean * scale
        yn = y * scale + shift                                     # one FMA pass

        out_ref[0] = yn[:Cout, :] + yn[Cout:, :]                   # branch sum

    return kernel


@jax.jit
def short_cut_block(x_nchw, params):
    """x_nchw: (N, Cin, H, W) float32. Returns (N, Cout, H, W) float32."""
    w1, b1, g1, be1, w3, b3, g3, be3 = params
    N, Cin, H, W = x_nchw.shape
    Cout = w1.shape[0]
    HW = H * W

    x = x_nchw.astype(jnp.float32)

    # im2col directly in NCHW layout (no transpose needed anywhere): zero-pad
    # spatial by 1 and gather the 9 shifted taps -> (N, 9*Cin, H*W).
    x_pad = jnp.pad(x, ((0, 0), (0, 0), (1, 1), (1, 1)))
    taps = [x_pad[:, :, ky:ky + H, kx:kx + W]
            for ky in range(3) for kx in range(3)]
    patches = (jnp.stack(taps, axis=1)           # (N, 9, Cin, H, W)
               .reshape(N, 9 * Cin, HW)
               .astype(jnp.bfloat16))            # bf16 MXU inputs

    # Fused weight (2*Cout, 9*Cin), tap-major / cin-minor to match the patches:
    # rows [0:Cout]       = 3x3 conv weights
    # rows [Cout:2*Cout]  = 1x1 conv weights embedded at centre tap (index 4)
    w3_flat = jnp.transpose(w3, (0, 2, 3, 1)).reshape(Cout, 9 * Cin)
    w1_flat = (jnp.zeros((Cout, 9 * Cin), w1.dtype)
               .at[:, 4 * Cin:5 * Cin].set(w1[:, :, 0, 0]))
    wf = jnp.concatenate([w3_flat, w1_flat], axis=0).astype(jnp.bfloat16)

    bf = jnp.concatenate([b3, b1]).reshape(2 * Cout, 1).astype(jnp.float32)
    gf = jnp.concatenate([g3, g1]).reshape(2 * Cout, 1).astype(jnp.float32)
    bef = jnp.concatenate([be3, be1]).reshape(2 * Cout, 1).astype(jnp.float32)

    kernel = _make_kernel(HW, Cout)

    out = pl.pallas_call(
        kernel,
        out_shape=jax.ShapeDtypeStruct((N, Cout, HW), jnp.float32),
        grid_spec=pltpu.PrefetchScalarGridSpec(
            num_scalar_prefetch=0,
            grid=(N,),
            in_specs=[
                pl.BlockSpec((1, 9 * Cin, HW), lambda n: (n, 0, 0)),   # patches
                pl.BlockSpec((2 * Cout, 9 * Cin), lambda n: (0, 0)),   # fused W
                pl.BlockSpec((2 * Cout, 1), lambda n: (0, 0)),         # bias
                pl.BlockSpec((2 * Cout, 1), lambda n: (0, 0)),         # gamma
                pl.BlockSpec((2 * Cout, 1), lambda n: (0, 0)),         # beta
            ],
            out_specs=pl.BlockSpec((1, Cout, HW), lambda n: (n, 0, 0)),
        ),
        compiler_params=pltpu.CompilerParams(
            dimension_semantics=("parallel",)),
    )(patches, wf, bf, gf, bef)

    # Output already in NCHW order; reshape is metadata-only (no transpose).
    return out.reshape(N, Cout, H, W)


def reference(x_nchw, params):
    """Pure-JAX f32 reference matching the PyTorch module."""
    w1, b1, g1, be1, w3, b3, g3, be3 = params

    def branch(x, w, b, gamma, beta, pad):
        y = jax.lax.conv_general_dilated(
            x, w, (1, 1), [(pad, pad), (pad, pad)],
            dimension_numbers=("NCHW", "OIHW", "NCHW"),
            precision=jax.lax.Precision.HIGHEST)
        y = jnp.maximum(y + b[None, :, None, None], 0.0)
        m = jnp.mean(y, axis=(2, 3), keepdims=True)
        v = jnp.mean((y - m) ** 2, axis=(2, 3), keepdims=True)
        y = (y - m) * jax.lax.rsqrt(v + EPS)
        return y * gamma[None, :, None, None] + beta[None, :, None, None]

    return (branch(x_nchw, w1, b1, g1, be1, 0) +
            branch(x_nchw, w3, b3, g3, be3, 1))


if __name__ == "__main__":
    N, Cin, Cout, H, W = 2, 4, 4, 16, 16

    key = jax.random.PRNGKey(0)
    ks = jax.random.split(key, 9)
    x = jax.random.normal(ks[0], (N, Cin, H, W), jnp.float32)

    # Deterministic synthetic parameters (PyTorch weight layouts: OIHW, O).
    w1 = 0.2 * jax.random.normal(ks[1], (Cout, Cin, 1, 1), jnp.float32)
    b1 = 0.1 * jax.random.normal(ks[2], (Cout,), jnp.float32)
    g1 = 1.0 + 0.1 * jax.random.normal(ks[3], (Cout,), jnp.float32)
    be1 = 0.1 * jax.random.normal(ks[4], (Cout,), jnp.float32)
    w3 = 0.1 * jax.random.normal(ks[5], (Cout, Cin, 3, 3), jnp.float32)
    b3 = 0.1 * jax.random.normal(ks[6], (Cout,), jnp.float32)
    g3 = 1.0 + 0.1 * jax.random.normal(ks[7], (Cout,), jnp.float32)
    be3 = 0.1 * jax.random.normal(ks[8], (Cout,), jnp.float32)
    params = (w1, b1, g1, be1, w3, b3, g3, be3)

    out = jax.block_until_ready(short_cut_block(x, params))
    ref = jax.block_until_ready(reference(x, params))

    assert out.shape == (N, Cout, H, W)
    # Tolerance accounts for bf16 MXU inputs (f32 accumulation / f32 epilogue).
    if not jnp.allclose(out, ref, rtol=3e-2, atol=3e-2):
        err = float(jnp.max(jnp.abs(out - ref)))
        raise AssertionError(f"Pallas output mismatch vs reference (max |err|={err})")

    print("KERNEL_OK")
</pallas_src>

<mosaic_0001>
module attributes {stable_mosaic.version = 11 : i64} {
  func.func @kernel(%arg0: i32, %arg1: memref<1x36x256xbf16, #tpu.memory_space<vmem>>, %arg2: memref<8x36xbf16, #tpu.memory_space<vmem>>, %arg3: memref<8x1xf32, #tpu.memory_space<vmem>>, %arg4: memref<8x1xf32, #tpu.memory_space<vmem>>, %arg5: memref<8x1xf32, #tpu.memory_space<vmem>>, %arg6: memref<1x4x256xf32, #tpu.memory_space<vmem>>) attributes {dimension_semantics = [#tpu.dimension_semantics<parallel>], iteration_bounds = array<i64: 2>, scalar_prefetch = 0 : i64, scratch_operands = 0 : i64, tpu.core_type = #tpu.core_type<tc>, window_params = [{transform_indices = @transform_0, window_bounds = array<i64: 1, 36, 256>}, {pipeline_mode = #tpu.pipeline_mode<synchronous>, transform_indices = @transform_1, window_bounds = array<i64: 8, 36>}, {pipeline_mode = #tpu.pipeline_mode<synchronous>, transform_indices = @transform_2, window_bounds = array<i64: 8, 1>}, {pipeline_mode = #tpu.pipeline_mode<synchronous>, transform_indices = @transform_3, window_bounds = array<i64: 8, 1>}, {pipeline_mode = #tpu.pipeline_mode<synchronous>, transform_indices = @transform_4, window_bounds = array<i64: 8, 1>}, {transform_indices = @transform_5, window_bounds = array<i64: 1, 4, 256>}]} {
    %c0 = arith.constant 0 : index
    %c0_0 = arith.constant 0 : index
    %0 = vector.load %arg2[%c0, %c0_0] : memref<8x36xbf16, #tpu.memory_space<vmem>>, vector<8x36xbf16>
    %c0_1 = arith.constant 0 : index
    %c0_2 = arith.constant 0 : index
    %c0_3 = arith.constant 0 : index
    %1 = vector.load %arg1[%c0_1, %c0_2, %c0_3] : memref<1x36x256xbf16, #tpu.memory_space<vmem>>, vector<1x36x256xbf16>
    %2 = vector.shape_cast %1 : vector<1x36x256xbf16> to vector<36x256xbf16>
    %cst = arith.constant dense<0.000000e+00> : vector<8x256xf32>
    %3 = tpu.matmul %0, %2, %cst {dimension_numbers = #tpu.dot_dimension_numbers<[1], [0], [0], [1], [0, 0, 1, 1], [], []>} : vector<8x36xbf16>, vector<36x256xbf16>, vector<8x256xf32> -> vector<8x256xf32>
    %c0_4 = arith.constant 0 : index
    %c0_5 = arith.constant 0 : index
    %4 = vector.load %arg3[%c0_4, %c0_5] : memref<8x1xf32, #tpu.memory_space<vmem>>, vector<8x1xf32>
    %5 = vector.broadcast %4 : vector<8x1xf32> to vector<8x256xf32>
    %6 = arith.addf %3, %5 : vector<8x256xf32>
    %cst_6 = arith.constant 0.000000e+00 : f32
    %7 = vector.broadcast %cst_6 : f32 to vector<8x256xf32>
    %8 = arith.maximumf %6, %7 : vector<8x256xf32>
    %cst_7 = arith.constant dense<0.000000e+00> : vector<8xf32>
    %9 = vector.multi_reduction <add>, %8, %cst_7 [1] : vector<8x256xf32> to vector<8xf32>
    %10 = vector.shape_cast %9 : vector<8xf32> to vector<8x1xf32>
    %11 = arith.mulf %8, %8 : vector<8x256xf32>
    %cst_8 = arith.constant dense<0.000000e+00> : vector<8xf32>
    %12 = vector.multi_reduction <add>, %11, %cst_8 [1] : vector<8x256xf32> to vector<8xf32>
    %13 = vector.shape_cast %12 : vector<8xf32> to vector<8x1xf32>
    %cst_9 = arith.constant 3.906250e-03 : f32
    %14 = vector.broadcast %cst_9 : f32 to vector<8x1xf32>
    %15 = arith.mulf %10, %14 : vector<8x1xf32>
    %cst_10 = arith.constant 3.906250e-03 : f32
    %16 = vector.broadcast %cst_10 : f32 to vector<8x1xf32>
    %17 = arith.mulf %13, %16 : vector<8x1xf32>
    %18 = arith.mulf %15, %15 : vector<8x1xf32>
    %19 = arith.subf %17, %18 : vector<8x1xf32>
    %cst_11 = arith.constant 0.000000e+00 : f32
    %20 = vector.broadcast %cst_11 : f32 to vector<8x1xf32>
    %21 = arith.maximumf %19, %20 : vector<8x1xf32>
    %c0_12 = arith.constant 0 : index
    %c0_13 = arith.constant 0 : index
    %22 = vector.load %arg4[%c0_12, %c0_13] : memref<8x1xf32, #tpu.memory_space<vmem>>, vector<8x1xf32>
    %cst_14 = arith.constant 9.99999974E-6 : f32
    %23 = vector.broadcast %cst_14 : f32 to vector<8x1xf32>
    %24 = arith.addf %21, %23 : vector<8x1xf32>
    %25 = math.rsqrt %24 : vector<8x1xf32>
    %26 = arith.mulf %22, %25 : vector<8x1xf32>
    %c0_15 = arith.constant 0 : index
    %c0_16 = arith.constant 0 : index
    %27 = vector.load %arg5[%c0_15, %c0_16] : memref<8x1xf32, #tpu.memory_space<vmem>>, vector<8x1xf32>
    %28 = arith.mulf %15, %26 : vector<8x1xf32>
    %29 = arith.subf %27, %28 : vector<8x1xf32>
    %30 = vector.broadcast %26 : vector<8x1xf32> to vector<8x256xf32>
    %31 = arith.mulf %8, %30 : vector<8x256xf32>
    %32 = vector.broadcast %29 : vector<8x1xf32> to vector<8x256xf32>
    %33 = arith.addf %31, %32 : vector<8x256xf32>
    %34 = vector.extract_strided_slice %33 {offsets = [0, 0], sizes = [4, 256], strides = [1, 1]} : vector<8x256xf32> to vector<4x256xf32>
    %35 = vector.extract_strided_slice %33 {offsets = [4, 0], sizes = [4, 256], strides = [1, 1]} : vector<8x256xf32> to vector<4x256xf32>
    %36 = arith.addf %34, %35 : vector<4x256xf32>
    %c0_17 = arith.constant 0 : index
    %c0_18 = arith.constant 0 : index
    %c0_19 = arith.constant 0 : index
    %37 = vector.load %arg6[%c0_17, %c0_18, %c0_19] : memref<1x4x256xf32, #tpu.memory_space<vmem>>, vector<1x4x256xf32>
    %38 = vector.shape_cast %37 : vector<1x4x256xf32> to vector<4x256xf32>
    %39 = vector.shape_cast %36 : vector<4x256xf32> to vector<1x4x256xf32>
    tpu.vector_store %arg6[%c0_17, %c0_18, %c0_19], %39 {strides = array<i32>} : memref<1x4x256xf32, #tpu.memory_space<vmem>>, vector<1x4x256xf32>,
    return
  }
  func.func @transform_0(%arg0: i32) -> (i32, i32, i32) {
    %c0_i32 = arith.constant 0 : i32
    %c0_i32_0 = arith.constant 0 : i32
    %c0_i32_1 = arith.constant 0 : i32
    return %arg0, %c0_i32, %c0_i32_0 : i32, i32, i32
  }
  func.func @transform_1(%arg0: i32) -> (i32, i32) {
    %c0_i32 = arith.constant 0 : i32
    %c0_i32_0 = arith.constant 0 : i32
    %c0_i32_1 = arith.constant 0 : i32
    return %c0_i32, %c0_i32_0 : i32, i32
  }
  func.func @transform_2(%arg0: i32) -> (i32, i32) {
    %c0_i32 = arith.constant 0 : i32
    %c0_i32_0 = arith.constant 0 : i32
    %c0_i32_1 = arith.constant 0 : i32
    return %c0_i32, %c0_i32_0 : i32, i32
  }
  func.func @transform_3(%arg0: i32) -> (i32, i32) {
    %c0_i32 = arith.constant 0 : i32
    %c0_i32_0 = arith.constant 0 : i32
    %c0_i32_1 = arith.constant 0 : i32
    return %c0_i32, %c0_i32_0 : i32, i32
  }
  func.func @transform_4(%arg0: i32) -> (i32, i32) {
    %c0_i32 = arith.constant 0 : i32
    %c0_i32_0 = arith.constant 0 : i32
    %c0_i32_1 = arith.constant 0 : i32
    return %c0_i32, %c0_i32_0 : i32, i32
  }
  func.func @transform_5(%arg0: i32) -> (i32, i32, i32) {
    %c0_i32 = arith.constant 0 : i32
    %c0_i32_0 = arith.constant 0 : i32
    %c0_i32_1 = arith.constant 0 : i32
    return %arg0, %c0_i32, %c0_i32_0 : i32, i32, i32
  }
}

</mosaic_0001>

<llo_original>
// kernel: short_cut_block.1
$region0: #{short_cut_block.1}
  #allocation0 [shape = 'u32[]', space=smem, size = 0x4, offset = 0x4, fixed_abs, tag = 'smem constant byte address 0x4 - core index']
  #allocation1 [shape = 'u32[72,128]{1,0:T(1,128)}', space=vmem, size = 0x9000, scoped, tag = 'internal scratch']
  %s0 = inlined_call_operand.vmem [shape: bf16[2,36,256], index: 0, kind: input, shape index: {}]
  %s1 = inlined_call_operand.vmem [shape: bf16[8,36], index: 1, kind: input, shape index: {}]
  %s2 = inlined_call_operand.vmem [shape: f32[8,1], index: 2, kind: input, shape index: {}]
  %s3 = inlined_call_operand.vmem [shape: f32[8,1], index: 3, kind: input, shape index: {}]
  %s4 = inlined_call_operand.vmem [shape: f32[8,1], index: 4, kind: input, shape index: {}]
  %s5 = inlined_call_operand.vmem [shape: f32[2,4,256], index: 5, kind: output, shape index: {}]
  %s6 = sld [smem:[#allocation0]]
  $region53: #{short_cut_block.1} parent=0
    _
  %s8 = ssub.s32 1, %s6
  %s9 = scalar_select 0, %s8, %s6
  loop: start=0, step=1, limit=4
  $region2: #{short_cut_block.1} parent=0 // loop_pre_header
    _
  $region3: #{short_cut_block.1} parent=0 // loop_header
    %s11 = sphi 0, %s15
    %p12 = scmp.ge.s32.totalorder %s11, 4
    %s21 = sphi 0, %s23
    %s24 = sphi 0, %s21
    %s25 = sphi 0, %s24
    %s41 = sphi 0, %s25
    %s45 = sphi 0, %s45
    %s47 = sphi 0, %s45
    %s48 = sphi 0, %s47
    %s62 = sphi 0, %s48
    %s66 = sphi 0, %s66
    %s68 = sphi 0, %s66
    %s69 = sphi 0, %s68
    %s83 = sphi 0, %s69
    %s87 = sphi 0, %s87
    %s89 = sphi 0, %s87
    %s90 = sphi 0, %s89
    %s104 = sphi 0, %s90
    %s108 = sphi 0, %s108
    %s110 = sphi 0, %s108
    %s111 = sphi 0, %s110
    %s125 = sphi 0, %s111
    %s131 = sphi 0, %s133
    %s134 = sphi 0, %s131
    %s135 = sphi 0, %s134
    %s151 = sphi 0, %s135
  $region4: #{short_cut_block.1} parent=0 // loop_header_branch
    %14 = sbr.rel (%p12) target = $region8
  $region5: #{short_cut_block.1} parent=0 // loop_body
    %s16 = ssub.s32 %s11, 1
    %s17 = ssub.s32 %s11, 2
    %s18 = sadd.s32 %s11, 1
    %s19 = ssub.s32 %s11, %s18
    %p20 = scmp.eq.s32.totalorder %s19, 0
    %s22 = sadd.s32 %s21, 1
    %s23 = scalar_select %p20, %s21, %s22
    %p26 = pneg %p20
    %p27 = scmp.eq.s32.totalorder %s11, 1
    %p28 = por %p26, %p27
    %p29 = scmp.ne.s32.totalorder %s21, %s24
    %p30 = scmp.eq.s32.totalorder %s11, 0
    %p31 = por %p29, %p30
    %p32 = scmp.ne.s32.totalorder %s21, %s24
    %p33 = scmp.eq.s32.totalorder %s16, 1
    %p34 = por %p32, %p33
    %p35 = scmp.ne.s32.totalorder %s24, %s25
    %p36 = scmp.eq.s32.totalorder %s16, 0
    %p37 = por %p35, %p36
    %p38 = scmp.ne.s32.totalorder %s24, %s25
    %p39 = scmp.eq.s32.totalorder %s17, 1
    %p40 = por %p38, %p39
    %p42 = scmp.ne.s32.totalorder %s25, %s41
    %p43 = scmp.eq.s32.totalorder %s17, 0
    %p44 = por %p42, %p43
    %s46 = sadd.s32 %s45, 1
    %p49 = scmp.eq.s32.totalorder %s11, 1
    %p50 = scmp.ne.s32.totalorder %s45, %s47
    %p51 = scmp.eq.s32.totalorder %s11, 0
    %p52 = por %p50, %p51
    %p53 = scmp.ne.s32.totalorder %s45, %s47
    %p54 = scmp.eq.s32.totalorder %s16, 1
    %p55 = por %p53, %p54
    %p56 = scmp.ne.s32.totalorder %s47, %s48
    %p57 = scmp.eq.s32.totalorder %s16, 0
    %p58 = por %p56, %p57
    %p59 = scmp.ne.s32.totalorder %s47, %s48
    %p60 = scmp.eq.s32.totalorder %s17, 1
    %p61 = por %p59, %p60
    %p63 = scmp.ne.s32.totalorder %s48, %s62
    %p64 = scmp.eq.s32.totalorder %s17, 0
    %p65 = por %p63, %p64
    %s67 = sadd.s32 %s66, 1
    %p70 = scmp.eq.s32.totalorder %s11, 1
    %p71 = scmp.ne.s32.totalorder %s66, %s68
    %p72 = scmp.eq.s32.totalorder %s11, 0
    %p73 = por %p71, %p72
    %p74 = scmp.ne.s32.totalorder %s66, %s68
    %p75 = scmp.eq.s32.totalorder %s16, 1
    %p76 = por %p74, %p75
    %p77 = scmp.ne.s32.totalorder %s68, %s69
    %p78 = scmp.eq.s32.totalorder %s16, 0
    %p79 = por %p77, %p78
    %p80 = scmp.ne.s32.totalorder %s68, %s69
    %p81 = scmp.eq.s32.totalorder %s17, 1
    %p82 = por %p80, %p81
    %p84 = scmp.ne.s32.totalorder %s69, %s83
    %p85 = scmp.eq.s32.totalorder %s17, 0
    %p86 = por %p84, %p85
    %s88 = sadd.s32 %s87, 1
    %p91 = scmp.eq.s32.totalorder %s11, 1
    %p92 = scmp.ne.s32.totalorder %s87, %s89
    %p93 = scmp.eq.s32.totalorder %s11, 0
    %p94 = por %p92, %p93
    %p95 = scmp.ne.s32.totalorder %s87, %s89
    %p96 = scmp.eq.s32.totalorder %s16, 1
    %p97 = por %p95, %p96
    %p98 = scmp.ne.s32.totalorder %s89, %s90
    %p99 = scmp.eq.s32.totalorder %s16, 0
    %p100 = por %p98, %p99
    %p101 = scmp.ne.s32.totalorder %s89, %s90
    %p102 = scmp.eq.s32.totalorder %s17, 1
    %p103 = por %p101, %p102
    %p105 = scmp.ne.s32.totalorder %s90, %s104
    %p106 = scmp.eq.s32.totalorder %s17, 0
    %p107 = por %p105, %p106
    %s109 = sadd.s32 %s108, 1
    %p112 = scmp.eq.s32.totalorder %s11, 1
    %p113 = scmp.ne.s32.totalorder %s108, %s110
    %p114 = scmp.eq.s32.totalorder %s11, 0
    %p115 = por %p113, %p114
    %p116 = scmp.ne.s32.totalorder %s108, %s110
    %p117 = scmp.eq.s32.totalorder %s16, 1
    %p118 = por %p116, %p117
    %p119 = scmp.ne.s32.totalorder %s110, %s111
    %p120 = scmp.eq.s32.totalorder %s16, 0
    %p121 = por %p119, %p120
    %p122 = scmp.ne.s32.totalorder %s110, %s111
    %p123 = scmp.eq.s32.totalorder %s17, 1
    %p124 = por %p122, %p123
    %p126 = scmp.ne.s32.totalorder %s111, %s125
    %p127 = scmp.eq.s32.totalorder %s17, 0
    %p128 = por %p126, %p127
    %s129 = ssub.s32 %s11, %s18
    %p130 = scmp.eq.s32.totalorder %s129, 0
    %s132 = sadd.s32 %s131, 1
    %s133 = scalar_select %p130, %s131, %s132
    %p136 = pneg %p130
    %p137 = scmp.eq.s32.totalorder %s11, 1
    %p138 = por %p136, %p137
    %p139 = scmp.ne.s32.totalorder %s131, %s134
    %p140 = scmp.eq.s32.totalorder %s11, 0
    %p141 = por %p139, %p140
    %p142 = scmp.ne.s32.totalorder %s131, %s134
    %p143 = scmp.eq.s32.totalorder %s16, 1
    %p144 = por %p142, %p143
    %p145 = scmp.ne.s32.totalorder %s134, %s135
    %p146 = scmp.eq.s32.totalorder %s16, 0
    %p147 = por %p145, %p146
    %p148 = scmp.ne.s32.totalorder %s134, %s135
    %p149 = scmp.eq.s32.totalorder %s17, 1
    %p150 = por %p148, %p149
    %p152 = scmp.ne.s32.totalorder %s135, %s151
    %p153 = scmp.eq.s32.totalorder %s17, 0
    %p154 = por %p152, %p153
    %p155 = scmp.le.s32.totalorder 1, %s11
    %p156 = scmp.lt.s32.totalorder %s11, 3
    %p157 = pnand %p155, %p156
    %p158 = pneg %p157
    // Predicated region
    $region9: #{short_cut_block.1} parent=5 // pred_check
      _
    $region10: #{short_cut_block.1} parent=5 // pred_check_branch
      %160 = sbr.rel (%p157) target = $region12
    $region11: #{short_cut_block.1} parent=5 // pred_region
      %s161 = ssub.s32 %s11, 1
      // Predicated region
      $region13: #{short_cut_block.1} parent=11 // pred_check
        %p162 = pneg %p58
      $region14: #{short_cut_block.1} parent=11 // pred_check_branch
        %164 = sbr.rel (%p162) target = $region16
      $region15: #{short_cut_block.1} parent=11 // pred_region
        _
      $region16: #{short_cut_block.1} parent=11 // pred_fallthru
        _
      // Predicated region
      $region17: #{short_cut_block.1} parent=11 // pred_check
        %p165 = pneg %p79
      $region18: #{short_cut_block.1} parent=11 // pred_check_branch
        %167 = sbr.rel (%p165) target = $region20
      $region19: #{short_cut_block.1} parent=11 // pred_region
        _
      $region20: #{short_cut_block.1} parent=11 // pred_fallthru
        _
      // Predicated region
      $region21: #{short_cut_block.1} parent=11 // pred_check
        %p168 = pneg %p100
      $region22: #{short_cut_block.1} parent=11 // pred_check_branch
        %170 = sbr.rel (%p168) target = $region24
      $region23: #{short_cut_block.1} parent=11 // pred_region
        _
      $region24: #{short_cut_block.1} parent=11 // pred_fallthru
        _
      // Predicated region
      $region25: #{short_cut_block.1} parent=11 // pred_check
        %p171 = pneg %p121
      $region26: #{short_cut_block.1} parent=11 // pred_check_branch
        %173 = sbr.rel (%p171) target = $region28
      $region27: #{short_cut_block.1} parent=11 // pred_region
        _
      $region28: #{short_cut_block.1} parent=11 // pred_fallthru
        _
    $region12: #{short_cut_block.1} parent=5 // pred_fallthru
      _
    %p174 = scmp.lt.s32.totalorder %s11, 2
    // Predicated region
    $region29: #{short_cut_block.1} parent=5 // pred_check
      %p175 = pneg %p174
    $region30: #{short_cut_block.1} parent=5 // pred_check_branch
      %177 = sbr.rel (%p175) target = $region32
    $region31: #{short_cut_block.1} parent=5 // pred_region
      // Predicated region
      $region33: #{short_cut_block.1} parent=31 // pred_check
        %p178 = pneg %p31
      $region34: #{short_cut_block.1} parent=31 // pred_check_branch
        %180 = sbr.rel (%p178) target = $region36
      $region35: #{short_cut_block.1} parent=31 // pred_region
        %p181 = scmp.lt.s32.totalorder %s11, 1
        %s182 = scalar_select %p181, %s11, 1
        %s183 = smul.addr %s182, 10
        %s184 = smul.addr %s183, 4
        %s185 = scalar_lea.vmem %s0, %s184
      $region36: #{short_cut_block.1} parent=31 // pred_fallthru
        _
    $region32: #{short_cut_block.1} parent=5 // pred_fallthru
      _
    %p186 = scmp.le.s32.totalorder 1, %s11
    %p187 = scmp.lt.s32.totalorder %s11, 3
    %p188 = pnand %p186, %p187
    %p189 = pneg %p188
    // Predicated region
    $region37: #{short_cut_block.1} parent=5 // pred_check
      _
    $region38: #{short_cut_block.1} parent=5 // pred_check_branch
      %191 = sbr.rel (%p188) target = $region40
    $region39: #{short_cut_block.1} parent=5 // pred_region
      %s192 = ssub.s32 %s11, 1
      %p193 = scmp.lt.s32.totalorder %s16, 1
      %s194 = scalar_select %p193, %s16, 1
      %s195 = smul.addr %s194, 10
      %s196 = smul.addr %s195, 4
      %s197 = scalar_lea.vmem %s0, %s196
      %p198 = pneg %p37
      %p199 = pneg %p34
      %p200 = pneg %p58
      %p201 = pneg %p55
      %p202 = pneg %p79
      %p203 = pneg %p76
      %p204 = pneg %p100
      %p205 = pneg %p97
      %p206 = pneg %p121
      %p207 = pneg %p118
      %p208 = pneg %p147
      %p209 = pneg %p144
      %p210 = scmp.lt.s32.totalorder %s16, 1
      %s211 = scalar_select %p210, %s16, 1
      %s212 = smul.addr %s211, 2
      %s213 = smul.addr %s212, 4
      %s214 = scalar_lea.vmem %s5, %s213
      %p215 = scmp.lt.s32.totalorder %s16, 1
      %s216 = scalar_select %p215, %s16, 1
      %s217 = smul.addr %s216, 10
      %s218 = smul.addr %s217, 4
      %s219 = scalar_lea.vmem %s0, %s218
      %p220 = scmp.lt.s32.totalorder %s16, 1
      %s221 = scalar_select %p220, %s16, 1
      %s222 = smul.addr %s221, 2
      %s223 = smul.addr %s222, 4
      %s224 = scalar_lea.vmem %s5, %s223
      %v226 = vld [vmem:[%s1] sm:$0xf]
      %v227 = vld [vmem:[%s219] sm:$0xff]
      %v228 = vld [vmem:[%s219 + $0x8] sm:$0xff]
      %v229 = vld [vmem:[%s219 + $0x10] sm:$0xff]
      %v230 = vld [vmem:[%s219 + $0x18] sm:$0xff]
      %v231 = vld [vmem:[%s219 + $0x20] sm:$0x33]
      %v232 = vld [vmem:[%s2] sm:$0xff]
      %234 = vset.pattern.permute.xlu0 0
      %235 = vperm.xlu0 %234, %v232
      %v236 = vpop.permute.xlu0 %235
      %v243 = vunpack.c.l.b16 %v227
      %v244 = vunpack.c.h.b16 %v227
      %v245 = vunpack.c.l.b16 %v228
      %v246 = vunpack.c.h.b16 %v228
      %v247 = vunpack.c.l.b16 %v229
      %v248 = vunpack.c.h.b16 %v229
      %v249 = vunpack.c.l.b16 %v230
      %v250 = vunpack.c.h.b16 %v230
      %v251 = vunpack.c.l.b16 %v231
      %v252 = vunpack.c.h.b16 %v231
      %v253 = vpack.c.b16 %v245, %v243
      %v254 = vpack.c.b16 %v246, %v244
      %v255 = vpack.c.b16 %v249, %v247
      %v256 = vpack.c.b16 %v250, %v248
      %v257 = vpack.c.b16 %v251, %v251
      %v258 = vpack.c.b16 %v252, %v252
      %vm263 = vcmask 293888
      %v265 = vsel %vm263, %v226, 0
      %vm267 = vcmask 1041408
      %v269 = vsel %vm267, %v257, 0
      %v272 = vsel %vm267, %v258, 0
      %274 = vmatpush.bf16.msra.mxu0 0
      %275 = vmatpush.bf16.msra.mxu0 0
      %276 = vmatpush.bf16.msra.mxu0 0
      %277 = vmatpush.bf16.msra.mxu0 0
      %278 = vmatpush.bf16.msra.mxu0 0
      %279 = vmatpush.bf16.msra.mxu0 %v269
      %280 = vmatpush.bf16.msra.mxu0 %v255
      %281 = vmatpush.bf16.msra.mxu0 %v253
      %282 = vmatmul.bf16.gmra.mxu0 %v265
      %v283 = vpop.f32.mrf.mxu0
      %v284 = vadd.f32 %v236, %v283
      %v285 = vpop.f32.mrf.mxu0
      %286 = vdwg.mxu0
      %287 = vmatpush.bf16.msra.mxu0 0
      %288 = vmatpush.bf16.msra.mxu0 0
      %289 = vmatpush.bf16.msra.mxu0 0
      %290 = vmatpush.bf16.msra.mxu0 0
      %291 = vmatpush.bf16.msra.mxu0 0
      %292 = vmatpush.bf16.msra.mxu0 %v272
      %293 = vmatpush.bf16.msra.mxu0 %v256
      %294 = vmatpush.bf16.msra.mxu0 %v254
      %295 = vmatmul.bf16.gmra.mxu0 %v265
      %v296 = vpop.f32.mrf.mxu0
      %v297 = vadd.f32 %v236, %v296
      %v298 = vpop.f32.mrf.mxu0
      %299 = vdwg.mxu0
      %v300 = vmax.f32 %v284, 0.0
      %v301 = vmax.f32 %v297, 0.0
      %v302 = vadd.f32 %v300, %v301
      %303 = vadd.xlane.f32.xlu0 %v302
      %v304 = vpop.xlane.xlu0 %303
      %v305 = vmul.f32 %v300, %v300
      %v306 = vmul.f32 %v301, %v301
      %v307 = vadd.f32 %v305, %v306
      %308 = vadd.xlane.f32.xlu0 %v307
      %v309 = vpop.xlane.xlu0 %308
      %v310 = vmul.f32 %v304, 0.00390625
      %v311 = vmul.f32 %v309, 0.00390625
      %v312 = vmul.f32 %v310, %v310
      %v313 = vsub.f32 %v311, %v312
      %v314 = vmax.f32 %v313, 0.0
      %v315 = vld [vmem:[%s3] sm:$0xff]
      %v316 = vadd.f32 %v314, 1e-05
      %v317 = vrsqrt.pop %v316
      %v318 = vmul.f32 %v317, %v316
      %v319 = vmul.f32 %v318, %v317
      %v320 = vmul.f32 0.5, %v319
      %v321 = vsub.f32 1.5, %v320
      %v322 = vmul.f32 %v317, %v321
      %vm323 = vweird.f32 %v316
      %vm324 = vweird.f32 %v317
      %vm325 = vmor %vm323, %vm324
      %v326 = vsel %vm325, %v317, %v322
      %v327 = vmul.f32 %v315, %v326
      %v328 = vld [vmem:[%s4] sm:$0xff]
      %v329 = vmul.f32 %v310, %v327
      %v330 = vsub.f32 %v328, %v329
      %332 = vset.pattern.permute.xlu0 0
      %333 = vperm.xlu0 %332, %v327
      %v334 = vpop.permute.xlu0 %333
      %v336 = vmul.f32 %v300, %v334
      %v337 = vmul.f32 %v301, %v334
      %339 = vset.pattern.permute.xlu0 0
      %340 = vperm.xlu0 %339, %v330
      %v341 = vpop.permute.xlu0 %340
      %v343 = vadd.f32 %v336, %v341
      %v344 = vadd.f32 %v337, %v341
      %v347 = vrot.slane %v343, 4
      %v348 = vrot.slane %v344, 4
      %v351 = vadd.f32 %v343, %v347
      %v352 = vadd.f32 %v344, %v348
      %v355 = vrot.slane %v352, 4
      %vm356 = vcmask 1043456
      %v357 = vsel %vm356, %v351, %v355
      %359 = vst [vmem:[%s224] sm:$0xff] %v357
      %p360 = scmp.lt.s32.totalorder %s16, 1
      %s361 = scalar_select %p360, %s16, 1
      %s362 = smul.addr %s361, 2
      %s363 = smul.addr %s362, 4
      %s364 = scalar_lea.vmem %s5, %s363
      // Predicated region
      $region41: #{short_cut_block.1} parent=39 // pred_check
        %p365 = pneg %p144
      $region42: #{short_cut_block.1} parent=39 // pred_check_branch
        %367 = sbr.rel (%p365) target = $region44
      $region43: #{short_cut_block.1} parent=39 // pred_region
        _
      $region44: #{short_cut_block.1} parent=39 // pred_fallthru
        _
    $region40: #{short_cut_block.1} parent=5 // pred_fallthru
      _
    %p368 = scmp.le.s32.totalorder 2, %s11
    // Predicated region
    $region45: #{short_cut_block.1} parent=5 // pred_check
      %p369 = pneg %p368
    $region46: #{short_cut_block.1} parent=5 // pred_check_branch
      %371 = sbr.rel (%p369) target = $region48
    $region47: #{short_cut_block.1} parent=5 // pred_region
      %s372 = ssub.s32 %s11, 2
      // Predicated region
      $region49: #{short_cut_block.1} parent=47 // pred_check
        %p373 = pneg %p150
      $region50: #{short_cut_block.1} parent=47 // pred_check_branch
        %375 = sbr.rel (%p373) target = $region52
      $region51: #{short_cut_block.1} parent=47 // pred_region
        %p376 = scmp.lt.s32.totalorder %s17, 1
        %s377 = scalar_select %p376, %s17, 1
        %s378 = smul.addr %s377, 2
        %s379 = smul.addr %s378, 4
        %s380 = scalar_lea.vmem %s5, %s379
      $region52: #{short_cut_block.1} parent=47 // pred_fallthru
        _
    $region48: #{short_cut_block.1} parent=5 // pred_fallthru
      _
  $region6: #{short_cut_block.1} parent=0 // loop_footer
    %s15 = sadd.s32 1, %s11
  $region7: #{short_cut_block.1} parent=0 // loop_footer_branch
    %10 = sbr.rel target = $region3
  $region8: #{short_cut_block.1} parent=0 // loop_exit
    _

</llo_original>
